<compile_context>
chip_gen: v7x
topology: tpu7x:2x2x1
jax: 0.10.0
libtpu: 0.0.40
codegen_flags: <defaults>
</compile_context>

<pallas_src>
import functools
import math

import jax
import jax.numpy as jnp
from jax.experimental import pallas as pl
from jax.experimental.pallas import tpu as pltpu

LN_EPS = 1e-5
NEG_INF = -1e30          # finite "-inf": avoids inf-inf NaNs in the online softmax


def _round_up(a, b):
    return (a + b - 1) // b * b


def _pick_vmem_limit():
    # v5e/v6e: 128 MiB VMEM/TC -> use ~100 MiB; v7x: 64 MiB/TC -> stay at 48 MiB.
    try:
        cap = int(pltpu.get_tpu_info().vmem_capacity_bytes)
        return int(min(max(cap - 16 * 1024 * 1024, 48 * 1024 * 1024),
                       100 * 1024 * 1024))
    except Exception:
        return 48 * 1024 * 1024


# --------------------------------------------------------------------------- #
# Kernel 1: fused LayerNorm_q / LayerNorm_kv + folded q/k/v projections        #
# --------------------------------------------------------------------------- #
def _qkv_proj_kernel(x_ref, g1_ref, b1_ref, g2_ref, b2_ref,
                     wq_ref, bq_ref, wk_ref, bk_ref, wv_ref, bv_ref,
                     q_ref, k_ref, v_ref):
    x = x_ref[...].astype(jnp.float32)                       # (tm, dim)

    # Shared LayerNorm statistics (both LNs normalize the same x).
    mu = jnp.mean(x, axis=-1, keepdims=True)
    xc = x - mu
    var = jnp.mean(xc * xc, axis=-1, keepdims=True)
    xs = xc * jax.lax.rsqrt(var + LN_EPS)                    # (tm, dim) f32

    wq = wq_ref[...]                                         # bf16 weights
    wk = wk_ref[...]
    wv = wv_ref[...]

    xn1 = (xs * g1_ref[...] + b1_ref[...]).astype(wq.dtype)  # LN_q  -> bf16
    xn2 = (xs * g2_ref[...] + b2_ref[...]).astype(wk.dtype)  # LN_kv -> bf16

    # bf16 x bf16 matmuls with f32 accumulation (fast MXU path); bias add in f32.
    q = jnp.dot(xn1, wq, preferred_element_type=jnp.float32) + bq_ref[...]
    k = jnp.dot(xn2, wk, preferred_element_type=jnp.float32) + bk_ref[...]
    v = jnp.dot(xn2, wv, preferred_element_type=jnp.float32) + bv_ref[...]

    q_ref[...] = q.astype(q_ref.dtype)
    k_ref[...] = k.astype(k_ref.dtype)
    v_ref[...] = v.astype(v_ref.dtype)


# --------------------------------------------------------------------------- #
# Kernel 2: flash-style attention over KV tiles + out_proj + scale + residual  #
#   grid = (batch, q-tiles, kv-tiles); kv axis is the reduction ("arbitrary")   #
# --------------------------------------------------------------------------- #
def _flash_attn_kernel(x_ref, q_ref, k_ref, v_ref, wo_ref, bo_ref, ls_ref,
                       o_ref, m_sc, l_sc, acc_sc, *,
                       use_residual, n_keys, tile_k, mask_keys):
    j = pl.program_id(2)

    @pl.when(j == 0)
    def _init():
        m_sc[...] = jnp.full(m_sc.shape, NEG_INF, m_sc.dtype)
        l_sc[...] = jnp.zeros(l_sc.shape, l_sc.dtype)
        acc_sc[...] = jnp.zeros(acc_sc.shape, acc_sc.dtype)

    q = q_ref[...]                        # (H, tq, Dh) bf16 (pre-scaled by 1/sqrt(Dh))
    k = k_ref[...]                        # (H, tk, Dh) bf16
    v = v_ref[...]                        # (H, tk, Dh) bf16

    # scores for this KV tile: batched over heads, f32 accumulation on the MXU.
    s = jax.lax.dot_general(q, k, (((2,), (2,)), ((0,), (0,))),
                            preferred_element_type=jnp.float32)      # (H, tq, tk)

    if mask_keys:                          # static: only when the key axis is padded
        key_ids = j * tile_k + jax.lax.broadcasted_iota(jnp.int32, (1, 1, tile_k), 2)
        s = jnp.where(key_ids < n_keys, s, NEG_INF)

    # online (flash) softmax update, f32 throughout; normalization is deferred.
    m_prev = m_sc[...]
    m_new = jnp.maximum(m_prev, jnp.max(s, axis=-1, keepdims=True))  # (H, tq, 1)
    alpha = jnp.exp(m_prev - m_new)
    p = jnp.exp(s - m_new)                                           # unnormalized
    l_sc[...] = alpha * l_sc[...] + jnp.sum(p, axis=-1, keepdims=True)
    pv = jax.lax.dot_general(p.astype(v.dtype), v, (((2,), (1,)), ((0,), (0,))),
                             preferred_element_type=jnp.float32)     # (H, tq, Dh)
    acc_sc[...] = alpha * acc_sc[...] + pv
    m_sc[...] = m_new

    @pl.when(j == pl.num_programs(2) - 1)
    def _finalize():
        # Deferred softmax normalization: one approx reciprocal per (head, row) on
        # the otherwise idle EUP instead of an H*tq*N elementwise divide.
        o = acc_sc[...] * pl.reciprocal(l_sc[...], approx=True)      # (H, tq, Dh) f32

        # out_proj: concat over heads == sum_h o_h @ Wo_h, accumulated head-by-head
        # into one (tq, dim) f32 tile (no (H, tq, dim) intermediate, no head-sum).
        wo = wo_ref[...]                                             # (H, Dh, dim) bf16
        heads = o.shape[0]
        y = jnp.dot(o[0].astype(wo.dtype), wo[0],
                    preferred_element_type=jnp.float32)              # (tq, dim)
        for h in range(1, heads):
            y = y + jnp.dot(o[h].astype(wo.dtype), wo[h],
                            preferred_element_type=jnp.float32)
        y = y + bo_ref[...]

        if use_residual:
            y = x_ref[...].astype(jnp.float32) + y * ls_ref[...]
        o_ref[...] = y.astype(o_ref.dtype)


# --------------------------------------------------------------------------- #
# Host wrapper                                                                 #
# --------------------------------------------------------------------------- #
def mha_forward(x, params, *, heads, use_residual=True,
                tile_m=512, tile_q=256, tile_k=512, compute_dtype=jnp.bfloat16):
    """Self-attention forward pass of the MHA module. x: (B, N, dim) float32."""
    # TODO(synk): cross-attention `context` input (k/v from a second sequence) is
    # not wired up; only the self-attention path (context=None) is implemented.
    B, N, dim = x.shape
    assert dim % heads == 0, "dim must be divisible by heads"
    dh = dim // heads
    scale = 1.0 / math.sqrt(dh)
    f32 = jnp.float32
    vmem_limit = _pick_vmem_limit()

    # ---- host-side folding of the chained linears (exact linear algebra) -----
    w_in, b_in = params["w_in"].astype(f32), params["b_in"].astype(f32)
    Bq, Bk, Bv = w_in[:, :dim], w_in[:, dim:2 * dim], w_in[:, 2 * dim:]
    bq_i, bk_i, bv_i = b_in[:dim], b_in[dim:2 * dim], b_in[2 * dim:]
    Aq, aq = params["w_q"].astype(f32), params["b_q"].astype(f32)
    Akv, akv = params["w_kv"].astype(f32), params["b_kv"].astype(f32)
    Ck, Cv = Akv[:, :dim], Akv[:, dim:]
    ck, cv = akv[:dim], akv[dim:]

    wq = ((Aq @ Bq) * scale).astype(compute_dtype)           # q pre-scaled by 1/sqrt(Dh)
    bq = ((aq @ Bq + bq_i) * scale).reshape(1, dim).astype(f32)
    wk = (Ck @ Bk).astype(compute_dtype)
    bk = (ck @ Bk + bk_i).reshape(1, dim).astype(f32)
    wv = (Cv @ Bv).astype(compute_dtype)
    bv = (cv @ Bv + bv_i).reshape(1, dim).astype(f32)

    wo3 = params["w_out"].astype(f32).reshape(heads, dh, dim).astype(compute_dtype)
    bo = params["b_out"].astype(f32).reshape(1, dim)
    ls = jnp.asarray(params["layer_scale"], f32).reshape(-1)
    if ls.size == 1:
        ls = jnp.full((dim,), ls[0], f32)
    ls = ls.reshape(1, dim)

    g1 = params["ln_q_g"].astype(f32).reshape(1, dim)
    be1 = params["ln_q_b"].astype(f32).reshape(1, dim)
    g2 = params["ln_kv_g"].astype(f32).reshape(1, dim)
    be2 = params["ln_kv_b"].astype(f32).reshape(1, dim)

    # -------------------- kernel 1: LN + QKV projection -----------------------
    rows = B * N
    tm = min(tile_m, _round_up(rows, 16))        # bf16 outputs -> sublane multiple 16
    rows_p = _round_up(rows, tm)                 # cdiv-style padding, no assert
    x2d = x.reshape(rows, dim).astype(f32)
    if rows_p != rows:
        x2d = jnp.pad(x2d, ((0, rows_p - rows), (0, 0)))

    def const(shape):
        return pl.BlockSpec(shape, lambda i, _s=len(shape): (0,) * _s)

    row_spec = pl.BlockSpec((tm, dim), lambda i: (i, 0))

    q2d, k2d, v2d = pl.pallas_call(
        _qkv_proj_kernel,
        out_shape=tuple(jax.ShapeDtypeStruct((rows_p, dim), compute_dtype)
                        for _ in range(3)),
        grid_spec=pltpu.PrefetchScalarGridSpec(
            num_scalar_prefetch=0,
            grid=(rows_p // tm,),
            in_specs=[row_spec,
                      const((1, dim)), const((1, dim)),      # LN_q  gamma/beta
                      const((1, dim)), const((1, dim)),      # LN_kv gamma/beta
                      const((dim, dim)), const((1, dim)),    # Wq, bq (folded)
                      const((dim, dim)), const((1, dim)),    # Wk, bk (folded)
                      const((dim, dim)), const((1, dim))],   # Wv, bv (folded)
            out_specs=[row_spec, row_spec, row_spec]),
        compiler_params=pltpu.CompilerParams(
            dimension_semantics=("parallel",),
            vmem_limit_bytes=vmem_limit),
    )(x2d, g1, be1, g2, be2, wq, bq, wk, bk, wv, bv)

    # split heads on the host: (B, H, N, Dh).  (Kept host-side: in-kernel head
    # split needs a lane->sublane transpose that is fragile for small Dh.)
    def to_heads(t):
        return t[:rows].reshape(B, N, heads, dh).transpose(0, 2, 1, 3)

    qh, kh, vh = to_heads(q2d), to_heads(k2d), to_heads(v2d)

    # -------------------- kernel 2: flash attention + epilogue -----------------
    tq = min(tile_q, _round_up(N, 16))           # bf16 tiles -> sublane multiple 16
    tk = min(tile_k, _round_up(N, 16))
    Nq_p = _round_up(N, tq)
    Nk_p = _round_up(N, tk)

    x_f = x.astype(f32)
    if Nq_p != N:                                # pad query rows (sliced off at end)
        qh = jnp.pad(qh, ((0, 0), (0, 0), (0, Nq_p - N), (0, 0)))
        x_f = jnp.pad(x_f, ((0, 0), (0, Nq_p - N), (0, 0)))
    if Nk_p != N:                                # pad keys (masked inside the kernel)
        kh = jnp.pad(kh, ((0, 0), (0, 0), (0, Nk_p - N), (0, 0)))
        vh = jnp.pad(vh, ((0, 0), (0, 0), (0, Nk_p - N), (0, 0)))

    kernel2 = functools.partial(_flash_attn_kernel,
                                use_residual=use_residual,
                                n_keys=N, tile_k=tk, mask_keys=(Nk_p != N))

    out = pl.pallas_call(
        kernel2,
        out_shape=jax.ShapeDtypeStruct((B, Nq_p, dim), jnp.float32),
        grid_spec=pltpu.PrefetchScalarGridSpec(
            num_scalar_prefetch=0,
            grid=(B, Nq_p // tq, Nk_p // tk),
            in_specs=[
                pl.BlockSpec((None, tq, dim), lambda b, i, j: (b, i, 0)),           # x
                pl.BlockSpec((None, heads, tq, dh), lambda b, i, j: (b, 0, i, 0)),  # q
                pl.BlockSpec((None, heads, tk, dh), lambda b, i, j: (b, 0, j, 0)),  # k
                pl.BlockSpec((None, heads, tk, dh), lambda b, i, j: (b, 0, j, 0)),  # v
                pl.BlockSpec((heads, dh, dim), lambda b, i, j: (0, 0, 0)),          # Wo
                pl.BlockSpec((1, dim), lambda b, i, j: (0, 0)),                     # bo
                pl.BlockSpec((1, dim), lambda b, i, j: (0, 0)),                     # layer_scale
            ],
            out_specs=pl.BlockSpec((None, tq, dim), lambda b, i, j: (b, i, 0)),
            scratch_shapes=[
                pltpu.VMEM((heads, tq, 1), jnp.float32),    # running max m
                pltpu.VMEM((heads, tq, 1), jnp.float32),    # running sum l
                pltpu.VMEM((heads, tq, dh), jnp.float32),   # running PV accumulator
            ]),
        compiler_params=pltpu.CompilerParams(
            dimension_semantics=("parallel", "parallel", "arbitrary"),
            vmem_limit_bytes=vmem_limit),
    )(x_f, qh, kh, vh, wo3, bo, ls)

    return out[:, :N, :].astype(x.dtype)


# --------------------------------------------------------------------------- #
# Parameter init (JAX layout: y = x @ W + b, i.e. W = torch_weight.T)          #
# --------------------------------------------------------------------------- #
def init_mha_params(key, dim, heads, layer_scale=0.1):
    ks = jax.random.split(key, 12)
    lim = 1.0 / math.sqrt(dim)
    xav = math.sqrt(6.0 / (dim + 3 * dim))      # xavier_uniform for in_proj_weight

    def u(k, shape, l):
        return jax.random.uniform(k, shape, jnp.float32, -l, l)

    return {
        "ln_q_g": 1.0 + 0.1 * jax.random.normal(ks[0], (dim,), jnp.float32),
        "ln_q_b": 0.1 * jax.random.normal(ks[1], (dim,), jnp.float32),
        "ln_kv_g": 1.0 + 0.1 * jax.random.normal(ks[2], (dim,), jnp.float32),
        "ln_kv_b": 0.1 * jax.random.normal(ks[3], (dim,), jnp.float32),
        "w_q": u(ks[4], (dim, dim), lim),        # to_q linear
        "b_q": u(ks[5], (dim,), lim),
        "w_kv": u(ks[6], (dim, 2 * dim), lim),   # to_kv linear
        "b_kv": u(ks[7], (2 * dim,), lim),
        "w_in": u(ks[8], (dim, 3 * dim), xav),   # MultiheadAttention in_proj
        "b_in": 0.05 * jax.random.normal(ks[9], (3 * dim,), jnp.float32),
        "w_out": u(ks[10], (dim, dim), lim),     # MultiheadAttention out_proj
        "b_out": 0.05 * jax.random.normal(ks[11], (dim,), jnp.float32),
        "layer_scale": jnp.full((1, 1, dim), layer_scale, jnp.float32),
    }


# --------------------------------------------------------------------------- #
# Pure-JAX f32 reference (mirrors the PyTorch module, no weight folding)       #
# --------------------------------------------------------------------------- #
def mha_reference(x, p, heads, use_residual=True):
    B, N, dim = x.shape
    dh = dim // heads

    def ln(t, g, b):
        mu = jnp.mean(t, -1, keepdims=True)
        var = jnp.mean((t - mu) ** 2, -1, keepdims=True)
        return (t - mu) / jnp.sqrt(var + LN_EPS) * g + b

    q_in = ln(x, p["ln_q_g"], p["ln_q_b"]) @ p["w_q"] + p["b_q"]
    kv = ln(x, p["ln_kv_g"], p["ln_kv_b"]) @ p["w_kv"] + p["b_kv"]
    k_in, v_in = kv[..., :dim], kv[..., dim:]

    w_in, b_in = p["w_in"], p["b_in"]
    q = q_in @ w_in[:, :dim] + b_in[:dim]
    k = k_in @ w_in[:, dim:2 * dim] + b_in[dim:2 * dim]
    v = v_in @ w_in[:, 2 * dim:] + b_in[2 * dim:]

    def split(t):
        return t.reshape(B, N, heads, dh).transpose(0, 2, 1, 3)

    qh, kh, vh = split(q), split(k), split(v)
    s = jnp.einsum("bhqd,bhkd->bhqk", qh, kh) / math.sqrt(dh)
    a = jax.nn.softmax(s, axis=-1)
    o = jnp.einsum("bhqk,bhkd->bhqd", a, vh)
    o = o.transpose(0, 2, 1, 3).reshape(B, N, dim)
    o = o @ p["w_out"] + p["b_out"]
    return x + o * p["layer_scale"][0] if use_residual else o


if __name__ == "__main__":
    key = jax.random.PRNGKey(0)
    kx1, kp1, kx2, kp2 = jax.random.split(key, 4)

    # Test 1: small shape (exercises key-padding mask within a single KV tile).
    B, N, dim, heads = 2, 8, 32, 8
    x = jax.random.normal(kx1, (B, N, dim), jnp.float32)
    params = init_mha_params(kp1, dim, heads, layer_scale=0.1)
    out = jax.block_until_ready(mha_forward(x, params, heads=heads))
    ref = mha_reference(x, params, heads)
    assert out.shape == x.shape
    err1 = float(jnp.max(jnp.abs(out - ref)))
    assert err1 < 2e-2, f"test1 max abs err {err1}"

    # Test 2: small tiles force the online-softmax reduction over several KV tiles
    # (3 q-tiles x 3 kv-tiles, ragged seq length -> masked trailing keys).
    B2, N2, dim2, heads2 = 2, 40, 64, 4
    x2 = jax.random.normal(kx2, (B2, N2, dim2), jnp.float32)
    params2 = init_mha_params(kp2, dim2, heads2, layer_scale=0.1)
    out2 = jax.block_until_ready(
        mha_forward(x2, params2, heads=heads2, tile_q=16, tile_k=16))
    ref2 = mha_reference(x2, params2, heads2)
    assert out2.shape == x2.shape
    err2 = float(jnp.max(jnp.abs(out2 - ref2)))
    assert err2 < 2e-2, f"test2 max abs err {err2}"

    print("KERNEL_OK")
</pallas_src>

<mosaic_0001>
module attributes {stable_mosaic.version = 11 : i64} {
  func.func @_qkv_proj_kernel(%arg0: i32, %arg1: memref<16x32xf32, #tpu.memory_space<vmem>>, %arg2: memref<1x32xf32, #tpu.memory_space<vmem>>, %arg3: memref<1x32xf32, #tpu.memory_space<vmem>>, %arg4: memref<1x32xf32, #tpu.memory_space<vmem>>, %arg5: memref<1x32xf32, #tpu.memory_space<vmem>>, %arg6: memref<32x32xbf16, #tpu.memory_space<vmem>>, %arg7: memref<1x32xf32, #tpu.memory_space<vmem>>, %arg8: memref<32x32xbf16, #tpu.memory_space<vmem>>, %arg9: memref<1x32xf32, #tpu.memory_space<vmem>>, %arg10: memref<32x32xbf16, #tpu.memory_space<vmem>>, %arg11: memref<1x32xf32, #tpu.memory_space<vmem>>, %arg12: memref<16x32xbf16, #tpu.memory_space<vmem>>, %arg13: memref<16x32xbf16, #tpu.memory_space<vmem>>, %arg14: memref<16x32xbf16, #tpu.memory_space<vmem>>) attributes {dimension_semantics = [#tpu.dimension_semantics<parallel>], iteration_bounds = array<i64: 1>, scalar_prefetch = 0 : i64, scratch_operands = 0 : i64, tpu.core_type = #tpu.core_type<tc>, window_params = [{transform_indices = @transform_0, window_bounds = array<i64: 16, 32>}, {pipeline_mode = #tpu.pipeline_mode<synchronous>, transform_indices = @transform_1, window_bounds = array<i64: 1, 32>}, {pipeline_mode = #tpu.pipeline_mode<synchronous>, transform_indices = @transform_2, window_bounds = array<i64: 1, 32>}, {pipeline_mode = #tpu.pipeline_mode<synchronous>, transform_indices = @transform_3, window_bounds = array<i64: 1, 32>}, {pipeline_mode = #tpu.pipeline_mode<synchronous>, transform_indices = @transform_4, window_bounds = array<i64: 1, 32>}, {pipeline_mode = #tpu.pipeline_mode<synchronous>, transform_indices = @transform_5, window_bounds = array<i64: 32, 32>}, {pipeline_mode = #tpu.pipeline_mode<synchronous>, transform_indices = @transform_6, window_bounds = array<i64: 1, 32>}, {pipeline_mode = #tpu.pipeline_mode<synchronous>, transform_indices = @transform_7, window_bounds = array<i64: 32, 32>}, {pipeline_mode = #tpu.pipeline_mode<synchronous>, transform_indices = @transform_8, window_bounds = array<i64: 1, 32>}, {pipeline_mode = #tpu.pipeline_mode<synchronous>, transform_indices = @transform_9, window_bounds = array<i64: 32, 32>}, {pipeline_mode = #tpu.pipeline_mode<synchronous>, transform_indices = @transform_10, window_bounds = array<i64: 1, 32>}, {transform_indices = @transform_11, window_bounds = array<i64: 16, 32>}, {transform_indices = @transform_12, window_bounds = array<i64: 16, 32>}, {transform_indices = @transform_13, window_bounds = array<i64: 16, 32>}]} {
    %c0 = arith.constant 0 : index
    %c0_0 = arith.constant 0 : index
    %0 = vector.load %arg1[%c0, %c0_0] : memref<16x32xf32, #tpu.memory_space<vmem>>, vector<16x32xf32>
    %cst = arith.constant dense<0.000000e+00> : vector<16xf32>
    %1 = vector.multi_reduction <add>, %0, %cst [1] : vector<16x32xf32> to vector<16xf32>
    %2 = vector.shape_cast %1 : vector<16xf32> to vector<16x1xf32>
    %cst_1 = arith.constant 3.200000e+01 : f32
    %3 = vector.broadcast %cst_1 : f32 to vector<16x1xf32>
    %4 = arith.divf %2, %3 : vector<16x1xf32>
    %5 = vector.broadcast %4 : vector<16x1xf32> to vector<16x32xf32>
    %6 = arith.subf %0, %5 : vector<16x32xf32>
    %7 = arith.mulf %6, %6 : vector<16x32xf32>
    %cst_2 = arith.constant dense<0.000000e+00> : vector<16xf32>
    %8 = vector.multi_reduction <add>, %7, %cst_2 [1] : vector<16x32xf32> to vector<16xf32>
    %9 = vector.shape_cast %8 : vector<16xf32> to vector<16x1xf32>
    %cst_3 = arith.constant 3.200000e+01 : f32
    %10 = vector.broadcast %cst_3 : f32 to vector<16x1xf32>
    %11 = arith.divf %9, %10 : vector<16x1xf32>
    %cst_4 = arith.constant 9.99999974E-6 : f32
    %12 = vector.broadcast %cst_4 : f32 to vector<16x1xf32>
    %13 = arith.addf %11, %12 : vector<16x1xf32>
    %14 = math.rsqrt %13 : vector<16x1xf32>
    %15 = vector.broadcast %14 : vector<16x1xf32> to vector<16x32xf32>
    %16 = arith.mulf %6, %15 : vector<16x32xf32>
    %c0_5 = arith.constant 0 : index
    %c0_6 = arith.constant 0 : index
    %17 = vector.load %arg6[%c0_5, %c0_6] : memref<32x32xbf16, #tpu.memory_space<vmem>>, vector<32x32xbf16>
    %c0_7 = arith.constant 0 : index
    %c0_8 = arith.constant 0 : index
    %18 = vector.load %arg8[%c0_7, %c0_8] : memref<32x32xbf16, #tpu.memory_space<vmem>>, vector<32x32xbf16>
    %c0_9 = arith.constant 0 : index
    %c0_10 = arith.constant 0 : index
    %19 = vector.load %arg10[%c0_9, %c0_10] : memref<32x32xbf16, #tpu.memory_space<vmem>>, vector<32x32xbf16>
    %c0_11 = arith.constant 0 : index
    %c0_12 = arith.constant 0 : index
    %20 = vector.load %arg2[%c0_11, %c0_12] : memref<1x32xf32, #tpu.memory_space<vmem>>, vector<1x32xf32>
    %21 = vector.broadcast %20 : vector<1x32xf32> to vector<16x32xf32>
    %22 = arith.mulf %16, %21 : vector<16x32xf32>
    %c0_13 = arith.constant 0 : index
    %c0_14 = arith.constant 0 : index
    %23 = vector.load %arg3[%c0_13, %c0_14] : memref<1x32xf32, #tpu.memory_space<vmem>>, vector<1x32xf32>
    %24 = vector.broadcast %23 : vector<1x32xf32> to vector<16x32xf32>
    %25 = arith.addf %22, %24 : vector<16x32xf32>
    %26 = arith.truncf %25 : vector<16x32xf32> to vector<16x32xbf16>
    %c0_15 = arith.constant 0 : index
    %c0_16 = arith.constant 0 : index
    %27 = vector.load %arg4[%c0_15, %c0_16] : memref<1x32xf32, #tpu.memory_space<vmem>>, vector<1x32xf32>
    %28 = vector.broadcast %27 : vector<1x32xf32> to vector<16x32xf32>
    %29 = arith.mulf %16, %28 : vector<16x32xf32>
    %c0_17 = arith.constant 0 : index
    %c0_18 = arith.constant 0 : index
    %30 = vector.load %arg5[%c0_17, %c0_18] : memref<1x32xf32, #tpu.memory_space<vmem>>, vector<1x32xf32>
    %31 = vector.broadcast %30 : vector<1x32xf32> to vector<16x32xf32>
    %32 = arith.addf %29, %31 : vector<16x32xf32>
    %33 = arith.truncf %32 : vector<16x32xf32> to vector<16x32xbf16>
    %cst_19 = arith.constant dense<0.000000e+00> : vector<16x32xf32>
    %34 = tpu.matmul %26, %17, %cst_19 {dimension_numbers = #tpu.dot_dimension_numbers<[1], [0], [0], [1], [0, 0, 1, 1], [], []>} : vector<16x32xbf16>, vector<32x32xbf16>, vector<16x32xf32> -> vector<16x32xf32>
    %c0_20 = arith.constant 0 : index
    %c0_21 = arith.constant 0 : index
    %35 = vector.load %arg7[%c0_20, %c0_21] : memref<1x32xf32, #tpu.memory_space<vmem>>, vector<1x32xf32>
    %36 = vector.broadcast %35 : vector<1x32xf32> to vector<16x32xf32>
    %37 = arith.addf %34, %36 : vector<16x32xf32>
    %cst_22 = arith.constant dense<0.000000e+00> : vector<16x32xf32>
    %38 = tpu.matmul %33, %18, %cst_22 {dimension_numbers = #tpu.dot_dimension_numbers<[1], [0], [0], [1], [0, 0, 1, 1], [], []>} : vector<16x32xbf16>, vector<32x32xbf16>, vector<16x32xf32> -> vector<16x32xf32>
    %c0_23 = arith.constant 0 : index
    %c0_24 = arith.constant 0 : index
    %39 = vector.load %arg9[%c0_23, %c0_24] : memref<1x32xf32, #tpu.memory_space<vmem>>, vector<1x32xf32>
    %40 = vector.broadcast %39 : vector<1x32xf32> to vector<16x32xf32>
    %41 = arith.addf %38, %40 : vector<16x32xf32>
    %cst_25 = arith.constant dense<0.000000e+00> : vector<16x32xf32>
    %42 = tpu.matmul %33, %19, %cst_25 {dimension_numbers = #tpu.dot_dimension_numbers<[1], [0], [0], [1], [0, 0, 1, 1], [], []>} : vector<16x32xbf16>, vector<32x32xbf16>, vector<16x32xf32> -> vector<16x32xf32>
    %c0_26 = arith.constant 0 : index
    %c0_27 = arith.constant 0 : index
    %43 = vector.load %arg11[%c0_26, %c0_27] : memref<1x32xf32, #tpu.memory_space<vmem>>, vector<1x32xf32>
    %44 = vector.broadcast %43 : vector<1x32xf32> to vector<16x32xf32>
    %45 = arith.addf %42, %44 : vector<16x32xf32>
    %46 = arith.truncf %37 : vector<16x32xf32> to vector<16x32xbf16>
    %c0_28 = arith.constant 0 : index
    %c0_29 = arith.constant 0 : index
    %47 = vector.load %arg12[%c0_28, %c0_29] : memref<16x32xbf16, #tpu.memory_space<vmem>>, vector<16x32xbf16>
    tpu.vector_store %arg12[%c0_28, %c0_29], %46 {strides = array<i32>} : memref<16x32xbf16, #tpu.memory_space<vmem>>, vector<16x32xbf16>,
    %48 = arith.truncf %41 : vector<16x32xf32> to vector<16x32xbf16>
    %c0_30 = arith.constant 0 : index
    %c0_31 = arith.constant 0 : index
    %49 = vector.load %arg13[%c0_30, %c0_31] : memref<16x32xbf16, #tpu.memory_space<vmem>>, vector<16x32xbf16>
    tpu.vector_store %arg13[%c0_30, %c0_31], %48 {strides = array<i32>} : memref<16x32xbf16, #tpu.memory_space<vmem>>, vector<16x32xbf16>,
    %50 = arith.truncf %45 : vector<16x32xf32> to vector<16x32xbf16>
    %c0_32 = arith.constant 0 : index
    %c0_33 = arith.constant 0 : index
    %51 = vector.load %arg14[%c0_32, %c0_33] : memref<16x32xbf16, #tpu.memory_space<vmem>>, vector<16x32xbf16>
    tpu.vector_store %arg14[%c0_32, %c0_33], %50 {strides = array<i32>} : memref<16x32xbf16, #tpu.memory_space<vmem>>, vector<16x32xbf16>,
    return
  }
  func.func @transform_0(%arg0: i32) -> (i32, i32) {
    %c0_i32 = arith.constant 0 : i32
    %c0_i32_0 = arith.constant 0 : i32
    return %arg0, %c0_i32 : i32, i32
  }
  func.func @transform_1(%arg0: i32) -> (i32, i32) {
    %c0_i32 = arith.constant 0 : i32
    %c0_i32_0 = arith.constant 0 : i32
    %c0_i32_1 = arith.constant 0 : i32
    return %c0_i32, %c0_i32_0 : i32, i32
  }
  func.func @transform_2(%arg0: i32) -> (i32, i32) {
    %c0_i32 = arith.constant 0 : i32
    %c0_i32_0 = arith.constant 0 : i32
    %c0_i32_1 = arith.constant 0 : i32
    return %c0_i32, %c0_i32_0 : i32, i32
  }
  func.func @transform_3(%arg0: i32) -> (i32, i32) {
    %c0_i32 = arith.constant 0 : i32
    %c0_i32_0 = arith.constant 0 : i32
    %c0_i32_1 = arith.constant 0 : i32
    return %c0_i32, %c0_i32_0 : i32, i32
  }
  func.func @transform_4(%arg0: i32) -> (i32, i32) {
    %c0_i32 = arith.constant 0 : i32
    %c0_i32_0 = arith.constant 0 : i32
    %c0_i32_1 = arith.constant 0 : i32
    return %c0_i32, %c0_i32_0 : i32, i32
  }
  func.func @transform_5(%arg0: i32) -> (i32, i32) {
    %c0_i32 = arith.constant 0 : i32
    %c0_i32_0 = arith.constant 0 : i32
    %c0_i32_1 = arith.constant 0 : i32
    return %c0_i32, %c0_i32_0 : i32, i32
  }
  func.func @transform_6(%arg0: i32) -> (i32, i32) {
    %c0_i32 = arith.constant 0 : i32
    %c0_i32_0 = arith.constant 0 : i32
    %c0_i32_1 = arith.constant 0 : i32
    return %c0_i32, %c0_i32_0 : i32, i32
  }
  func.func @transform_7(%arg0: i32) -> (i32, i32) {
    %c0_i32 = arith.constant 0 : i32
    %c0_i32_0 = arith.constant 0 : i32
    %c0_i32_1 = arith.constant 0 : i32
    return %c0_i32, %c0_i32_0 : i32, i32
  }
  func.func @transform_8(%arg0: i32) -> (i32, i32) {
    %c0_i32 = arith.constant 0 : i32
    %c0_i32_0 = arith.constant 0 : i32
    %c0_i32_1 = arith.constant 0 : i32
    return %c0_i32, %c0_i32_0 : i32, i32
  }
  func.func @transform_9(%arg0: i32) -> (i32, i32) {
    %c0_i32 = arith.constant 0 : i32
    %c0_i32_0 = arith.constant 0 : i32
    %c0_i32_1 = arith.constant 0 : i32
    return %c0_i32, %c0_i32_0 : i32, i32
  }
  func.func @transform_10(%arg0: i32) -> (i32, i32) {
    %c0_i32 = arith.constant 0 : i32
    %c0_i32_0 = arith.constant 0 : i32
    %c0_i32_1 = arith.constant 0 : i32
    return %c0_i32, %c0_i32_0 : i32, i32
  }
  func.func @transform_11(%arg0: i32) -> (i32, i32) {
    %c0_i32 = arith.constant 0 : i32
    %c0_i32_0 = arith.constant 0 : i32
    return %arg0, %c0_i32 : i32, i32
  }
  func.func @transform_12(%arg0: i32) -> (i32, i32) {
    %c0_i32 = arith.constant 0 : i32
    %c0_i32_0 = arith.constant 0 : i32
    return %arg0, %c0_i32 : i32, i32
  }
  func.func @transform_13(%arg0: i32) -> (i32, i32) {
    %c0_i32 = arith.constant 0 : i32
    %c0_i32_0 = arith.constant 0 : i32
    return %arg0, %c0_i32 : i32, i32
  }
}

</mosaic_0001>

<llo_original>
// kernel: tpu_custom_call.1
$region0: #{tpu_custom_call.1}
  #allocation0 [shape = 'u32[]', space=smem, size = 0x4, offset = 0x4, fixed_abs, tag = 'smem constant byte address 0x4 - core index']
  #allocation1 [shape = 'u32[144,128]{1,0:T(1,128)}', space=vmem, size = 0x12000, scoped, tag = 'internal scratch']
  %s0 = inlined_call_operand.hbm [shape: f32[16,32], index: 0, kind: input, shape index: {}]
  %s1 = inlined_call_operand.vmem [shape: f32[1,32], index: 1, kind: input, shape index: {}]
  %s2 = inlined_call_operand.vmem [shape: f32[1,32], index: 2, kind: input, shape index: {}]
  %s3 = inlined_call_operand.hbm [shape: f32[1,32], index: 3, kind: input, shape index: {}]
  %s4 = inlined_call_operand.hbm [shape: f32[1,32], index: 4, kind: input, shape index: {}]
  %s5 = inlined_call_operand.vmem [shape: bf16[32,32], index: 5, kind: input, shape index: {}]
  %s6 = inlined_call_operand.hbm [shape: f32[1,32], index: 6, kind: input, shape index: {}]
  %s7 = inlined_call_operand.hbm [shape: bf16[32,32], index: 7, kind: input, shape index: {}]
  %s8 = inlined_call_operand.hbm [shape: f32[1,32], index: 8, kind: input, shape index: {}]
  %s9 = inlined_call_operand.vmem [shape: bf16[32,32], index: 9, kind: input, shape index: {}]
  %s10 = inlined_call_operand.vmem [shape: f32[1,32], index: 10, kind: input, shape index: {}]
  %s11 = inlined_call_operand.hbm [shape: bf16[16,32], index: 11, kind: output, shape index: {0}]
  %s12 = inlined_call_operand.hbm [shape: bf16[16,32], index: 12, kind: output, shape index: {1}]
  %s13 = inlined_call_operand.hbm [shape: bf16[16,32], index: 13, kind: output, shape index: {2}]
  %14 = xla_tuple %s11, %s12, %s13
  %s15 = sld [smem:[#allocation0]]
  $region94: #{tpu_custom_call.1} parent=0
    _
  %s17 = ssub.s32 1, %s15
  %s18 = scalar_select 0, %s17, %s15
  $region1: #{tpu_custom_call.1} parent=0
    #allocation2 [shape = 'u8[8192]{0}', space=vmem, size = 0x2000, scoped, tag = 'input window, operand 0, single buffered']
    #allocation3 [shape = 's32[1]{0}', space=sflag, size = 0x4, scoped, tag = 'scoped memory for tpu_custom_call.1']
    #allocation4 [shape = 's32[1]{0}', space=sflag, size = 0x4, scoped, tag = 'scoped memory for tpu_custom_call.1']
    #allocation5 [shape = 'u8[512]{0}', space=vmem, size = 0x400, scoped, tag = 'input window, operand 3, single buffered']
    #allocation6 [shape = 's32[1]{0}', space=sflag, size = 0x4, scoped, tag = 'scoped memory for tpu_custom_call.1']
    #allocation7 [shape = 'u8[512]{0}', space=vmem, size = 0x400, scoped, tag = 'input window, operand 4, single buffered']
    #allocation8 [shape = 'u8[512]{0}', space=vmem, size = 0x400, scoped, tag = 'input window, operand 6, single buffered']
    #allocation9 [shape = 's32[1]{0}', space=sflag, size = 0x4, scoped, tag = 'scoped memory for tpu_custom_call.1']
    #allocation10 [shape = 'u8[8192]{0}', space=vmem, size = 0x2000, scoped, tag = 'input window, operand 7, single buffered']
    #allocation11 [shape = 'u8[512]{0}', space=vmem, size = 0x400, scoped, tag = 'input window, operand 8, single buffered']
    #allocation12 [shape = 's32[1]{0}', space=sflag, size = 0x4, scoped, tag = 'scoped memory for tpu_custom_call.1']
    #allocation13 [shape = 'u8[4096]{0}', space=vmem, size = 0x1000, scoped, tag = 'output window, operand 0, single buffered']
    #allocation14 [shape = 'u8[4096]{0}', space=vmem, size = 0x1000, scoped, tag = 'output window, operand 1, single buffered']
    #allocation15 [shape = 's32[1]{0}', space=sflag, size = 0x4, scoped, tag = 'scoped memory for tpu_custom_call.1']
    #allocation16 [shape = 'u8[4096]{0}', space=vmem, size = 0x1000, scoped, tag = 'output window, operand 2, single buffered']
    %19 = vsyncpa [#allocation3], 0
    %20 = vsyncpa [#allocation6], 0
    %21 = vsyncpa [#allocation9], 0
    %22 = vsyncpa [#allocation12], 0
    %23 = vsyncpa [#allocation4], 0
    %24 = vsyncpa [#allocation15], 0
    // Predicated region
    $region2: #{tpu_custom_call.1} parent=1 // pred_check
      _
    $region3: #{tpu_custom_call.1} parent=1 // pred_check_branch
      %26 = sbr.rel (0) target = $region5
    $region4: #{tpu_custom_call.1} parent=1 // pred_region
      %s28 = ssub.s32 256, 256
      %29 = vsyncadd [#allocation3], %s28
      %s30 = sshll.u32 [#allocation2], 4
      %s31 = int_to_ptr.vmem [resolvable:$true] %s30
      %36 = dma.hbm_to_vmem [thread:$0]  %s0, 256, %s31, [#allocation3], 128, 128, 8
    $region5: #{tpu_custom_call.1} parent=1 // pred_fallthru
      _
    // Predicated region
    $region6: #{tpu_custom_call.1} parent=1 // pred_check
      _
    $region7: #{tpu_custom_call.1} parent=1 // pred_check_branch
      %38 = sbr.rel (0) target = $region9
    $region8: #{tpu_custom_call.1} parent=1 // pred_region
      _
    $region9: #{tpu_custom_call.1} parent=1 // pred_fallthru
      _
    // Predicated region
    $region10: #{tpu_custom_call.1} parent=1 // pred_check
      _
    $region11: #{tpu_custom_call.1} parent=1 // pred_check_branch
      %40 = sbr.rel (0) target = $region13
    $region12: #{tpu_custom_call.1} parent=1 // pred_region
      _
    $region13: #{tpu_custom_call.1} parent=1 // pred_fallthru
      _
    // Predicated region
    $region14: #{tpu_custom_call.1} parent=1 // pred_check
      _
    $region15: #{tpu_custom_call.1} parent=1 // pred_check_branch
      %42 = sbr.rel (0) target = $region17
    $region16: #{tpu_custom_call.1} parent=1 // pred_region
      %s44 = ssub.s32 16, 16
      %45 = vsyncadd [#allocation6], %s44
      %s47 = sshll.u32 [#allocation5], 4
      %s48 = int_to_ptr.vmem [resolvable:$true] %s47
      %50 = dma.hbm_to_vmem [thread:$0]  %s3, 16, %s48, [#allocation6]
    $region17: #{tpu_custom_call.1} parent=1 // pred_fallthru
      _
    // Predicated region
    $region18: #{tpu_custom_call.1} parent=1 // pred_check
      _
    $region19: #{tpu_custom_call.1} parent=1 // pred_check_branch
      %52 = sbr.rel (0) target = $region21
    $region20: #{tpu_custom_call.1} parent=1 // pred_region
      %s54 = ssub.s32 16, 16
      %55 = vsyncadd [#allocation6], %s54
      %s57 = sshll.u32 [#allocation7], 4
      %s58 = int_to_ptr.vmem [resolvable:$true] %s57
      %60 = dma.hbm_to_vmem [thread:$0]  %s4, 16, %s58, [#allocation6]
    $region21: #{tpu_custom_call.1} parent=1 // pred_fallthru
      _
    // Predicated region
    $region22: #{tpu_custom_call.1} parent=1 // pred_check
      _
    $region23: #{tpu_custom_call.1} parent=1 // pred_check_branch
      %62 = sbr.rel (0) target = $region25
    $region24: #{tpu_custom_call.1} parent=1 // pred_region
      _
    $region25: #{tpu_custom_call.1} parent=1 // pred_fallthru
      _
    // Predicated region
    $region26: #{tpu_custom_call.1} parent=1 // pred_check
      _
    $region27: #{tpu_custom_call.1} parent=1 // pred_check_branch
      %64 = sbr.rel (0) target = $region29
    $region28: #{tpu_custom_call.1} parent=1 // pred_region
      %s66 = ssub.s32 16, 16
      %67 = vsyncadd [#allocation9], %s66
      %s69 = sshll.u32 [#allocation8], 4
      %s70 = int_to_ptr.vmem [resolvable:$true] %s69
      %72 = dma.hbm_to_vmem [thread:$0]  %s6, 16, %s70, [#allocation9]
    $region29: #{tpu_custom_call.1} parent=1 // pred_fallthru
      _
    // Predicated region
    $region30: #{tpu_custom_call.1} parent=1 // pred_check
      _
    $region31: #{tpu_custom_call.1} parent=1 // pred_check_branch
      %74 = sbr.rel (0) target = $region33
    $region32: #{tpu_custom_call.1} parent=1 // pred_region
      %s76 = ssub.s32 256, 256
      %77 = vsyncadd [#allocation9], %s76
      %s78 = sshll.u32 [#allocation10], 4
      %s79 = int_to_ptr.vmem [resolvable:$true] %s78
      %84 = dma.hbm_to_vmem [thread:$0]  %s7, 256, %s79, [#allocation9], 64, 64, 4
    $region33: #{tpu_custom_call.1} parent=1 // pred_fallthru
      _
    // Predicated region
    $region34: #{tpu_custom_call.1} parent=1 // pred_check
      _
    $region35: #{tpu_custom_call.1} parent=1 // pred_check_branch
      %86 = sbr.rel (0) target = $region37
    $region36: #{tpu_custom_call.1} parent=1 // pred_region
      %s88 = ssub.s32 16, 16
      %89 = vsyncadd [#allocation12], %s88
      %s91 = sshll.u32 [#allocation11], 4
      %s92 = int_to_ptr.vmem [resolvable:$true] %s91
      %94 = dma.hbm_to_vmem [thread:$0]  %s8, 16, %s92, [#allocation12]
    $region37: #{tpu_custom_call.1} parent=1 // pred_fallthru
      _
    // Predicated region
    $region38: #{tpu_custom_call.1} parent=1 // pred_check
      _
    $region39: #{tpu_custom_call.1} parent=1 // pred_check_branch
      %96 = sbr.rel (0) target = $region41
    $region40: #{tpu_custom_call.1} parent=1 // pred_region
      _
    $region41: #{tpu_custom_call.1} parent=1 // pred_fallthru
      _
    // Predicated region
    $region42: #{tpu_custom_call.1} parent=1 // pred_check
      _
    $region43: #{tpu_custom_call.1} parent=1 // pred_check_branch
      %98 = sbr.rel (0) target = $region45
    $region44: #{tpu_custom_call.1} parent=1 // pred_region
      _
    $region45: #{tpu_custom_call.1} parent=1 // pred_fallthru
      _
    // Predicated region
    $region46: #{tpu_custom_call.1} parent=1 // pred_check
      _
    $region47: #{tpu_custom_call.1} parent=1 // pred_check_branch
      %100 = sbr.rel (0) target = $region49
    $region48: #{tpu_custom_call.1} parent=1 // pred_region
      %101 = dma.done [#allocation3], 256
    $region49: #{tpu_custom_call.1} parent=1 // pred_fallthru
      _
    // Predicated region
    $region50: #{tpu_custom_call.1} parent=1 // pred_check
      _
    $region51: #{tpu_custom_call.1} parent=1 // pred_check_branch
      %103 = sbr.rel (0) target = $region53
    $region52: #{tpu_custom_call.1} parent=1 // pred_region
      %104 = dma.done [#allocation6], 16
    $region53: #{tpu_custom_call.1} parent=1 // pred_fallthru
      _
    // Predicated region
    $region54: #{tpu_custom_call.1} parent=1 // pred_check
      _
    $region55: #{tpu_custom_call.1} parent=1 // pred_check_branch
      %106 = sbr.rel (0) target = $region57
    $region56: #{tpu_custom_call.1} parent=1 // pred_region
      %107 = dma.done [#allocation6], 16
    $region57: #{tpu_custom_call.1} parent=1 // pred_fallthru
      _
    // Predicated region
    $region58: #{tpu_custom_call.1} parent=1 // pred_check
      _
    $region59: #{tpu_custom_call.1} parent=1 // pred_check_branch
      %109 = sbr.rel (0) target = $region61
    $region60: #{tpu_custom_call.1} parent=1 // pred_region
      %110 = dma.done [#allocation9], 16
    $region61: #{tpu_custom_call.1} parent=1 // pred_fallthru
      _
    // Predicated region
    $region62: #{tpu_custom_call.1} parent=1 // pred_check
      _
    $region63: #{tpu_custom_call.1} parent=1 // pred_check_branch
      %112 = sbr.rel (0) target = $region65
    $region64: #{tpu_custom_call.1} parent=1 // pred_region
      %113 = dma.done [#allocation9], 256
    $region65: #{tpu_custom_call.1} parent=1 // pred_fallthru
      _
    // Predicated region
    $region66: #{tpu_custom_call.1} parent=1 // pred_check
      _
    $region67: #{tpu_custom_call.1} parent=1 // pred_check_branch
      %115 = sbr.rel (0) target = $region69
    $region68: #{tpu_custom_call.1} parent=1 // pred_region
      %116 = dma.done [#allocation12], 16
    $region69: #{tpu_custom_call.1} parent=1 // pred_fallthru
      _
    %v118 = vld [vmem:[#allocation2] sm:$0xff]
    %v119 = vld [vmem:[#allocation2 + $0x8] sm:$0xff]
    %vm120 = vcmask 261120
    %v121 = vsel %vm120, %v118, 0.0
    %122 = vadd.xlane.f32.xlu0 %v121
    %v123 = vpop.xlane.xlu0 %122
    %v124 = vsel %vm120, %v119, 0.0
    %125 = vadd.xlane.f32.xlu0 %v124
    %v126 = vpop.xlane.xlu0 %125
    %v127 = vrcp.pop 32.0
    %v128 = vmul.f32 %v123, %v127
    %v129 = vmul.f32 %v126, %v127
    %v130 = vsub.f32 %v118, %v128
    %v131 = vsub.f32 %v119, %v129
    %v132 = vmul.f32 %v130, %v130
    %v133 = vmul.f32 %v131, %v131
    %v134 = vsel %vm120, %v132, 0.0
    %135 = vadd.xlane.f32.xlu0 %v134
    %v136 = vpop.xlane.xlu0 %135
    %v137 = vsel %vm120, %v133, 0.0
    %138 = vadd.xlane.f32.xlu0 %v137
    %v139 = vpop.xlane.xlu0 %138
    %v140 = vmul.f32 %v136, %v127
    %v141 = vmul.f32 %v139, %v127
    %v142 = vadd.f32 %v140, 1e-05
    %v143 = vadd.f32 %v141, 1e-05
    %v144 = vrsqrt.pop %v142
    %v145 = vrsqrt.pop %v143
    %v146 = vmul.f32 %v130, %v144
    %v147 = vmul.f32 %v131, %v145
    %v148 = vld [vmem:[%s5] sm:$0xf]
    %v149 = vld [vmem:[%s5 + $0x4] sm:$0xf]
    %v150 = vld [vmem:[%s5 + $0x8] sm:$0xf]
    %v151 = vld [vmem:[%s5 + $0xc] sm:$0xf]
    %v152 = vld [vmem:[#allocation10] sm:$0xf]
    %v153 = vld [vmem:[#allocation10 + $0x4] sm:$0xf]
    %v154 = vld [vmem:[#allocation10 + $0x8] sm:$0xf]
    %v155 = vld [vmem:[#allocation10 + $0xc] sm:$0xf]
    %v156 = vld [vmem:[%s9] sm:$0xf]
    %v157 = vld [vmem:[%s9 + $0x4] sm:$0xf]
    %v158 = vld [vmem:[%s9 + $0x8] sm:$0xf]
    %v159 = vld [vmem:[%s9 + $0xc] sm:$0xf]
    %v160 = vld [vmem:[%s1] sm:$0x1]
    %v162 = vlaneseq
    %v163 = vshrl.u32 %v162, 7
    %v164 = vsub.s32 0, %v163
    %v165 = vrot.slane %v160, %v164
    %v167 = vmul.f32 %v146, %v165
    %v168 = vmul.f32 %v147, %v165
    %v169 = vld [vmem:[%s2] sm:$0x1]
    %v171 = vlaneseq
    %v172 = vshrl.u32 %v171, 7
    %v173 = vsub.s32 0, %v172
    %v174 = vrot.slane %v169, %v173
    %v176 = vadd.f32 %v167, %v174
    %v177 = vadd.f32 %v168, %v174
    %v178 = vpack.c.bf16 %v177, %v176
    %v179 = vld [vmem:[#allocation5] sm:$0x1]
    %v181 = vlaneseq
    %v182 = vshrl.u32 %v181, 7
    %v183 = vsub.s32 0, %v182
    %v184 = vrot.slane %v179, %v183
    %v186 = vmul.f32 %v146, %v184
    %v187 = vmul.f32 %v147, %v184
    %v188 = vld [vmem:[#allocation7] sm:$0x1]
    %v190 = vlaneseq
    %v191 = vshrl.u32 %v190, 7
    %v192 = vsub.s32 0, %v191
    %v193 = vrot.slane %v188, %v192
    %v195 = vadd.f32 %v186, %v193
    %v196 = vadd.f32 %v187, %v193
    %v197 = vpack.c.bf16 %v196, %v195
    %v198 = vld [vmem:[#allocation8] sm:$0x1]
    %v200 = vlaneseq
    %v201 = vshrl.u32 %v200, 7
    %v202 = vsub.s32 0, %v201
    %v203 = vrot.slane %v198, %v202
    %v209 = vunpack.c.l.b16 %v148
    %v210 = vunpack.c.l.b16 %v149
    %v211 = vunpack.c.l.b16 %v150
    %v212 = vunpack.c.l.b16 %v151
    %v213 = vpack.c.b16 %v210, %v209
    %v214 = vpack.c.b16 %v212, %v211
    %v218 = vsel %vm120, %v178, 0
    %220 = vmatprep.subr.bf16.mxu0 0
    %221 = vmatpush1.bf16.msra.mxu0 %v213
    %222 = vmatprep.subr.bf16.mxu0 0
    %223 = vmatpush1.bf16.msra.mxu0 %v214
    %224 = vmatprep.subr.bf16.mxu0 0
    %225 = vmatpush1.bf16.msra.mxu0 0
    %226 = vmatprep.subr.bf16.mxu0 0
    %227 = vmatpush1.bf16.msra.mxu0 0
    %228 = vmatprep.subr.bf16.mxu0 0
    %229 = vmatpush1.bf16.msra.mxu0 0
    %230 = vmatprep.subr.bf16.mxu0 0
    %231 = vmatpush1.bf16.msra.mxu0 0
    %232 = vmatprep.subr.bf16.mxu0 0
    %233 = vmatpush1.bf16.msra.mxu0 0
    %234 = vmatprep.subr.bf16.mxu0 0
    %235 = vmatpush1.bf16.msra.mxu0 0
    %236 = vmatprep.subr.bf16.mxu0 0
    %237 = vmatpush1.bf16.msra.mxu0 0
    %238 = vmatprep.subr.bf16.mxu0 0
    %239 = vmatpush1.bf16.msra.mxu0 0
    %240 = vmatprep.subr.bf16.mxu0 0
    %241 = vmatpush1.bf16.msra.mxu0 0
    %242 = vmatprep.subr.bf16.mxu0 0
    %243 = vmatpush1.bf16.msra.mxu0 0
    %244 = vmatprep.subr.bf16.mxu0 0
    %245 = vmatpush1.bf16.msra.mxu0 0
    %246 = vmatprep.subr.bf16.mxu0 0
    %247 = vmatpush1.bf16.msra.mxu0 0
    %248 = vmatprep.subr.bf16.mxu0 0
    %249 = vmatpush1.bf16.msra.mxu0 0
    %250 = vmatprep.subr.bf16.mxu0 0
    %251 = vmatpush1.bf16.msra.mxu0 0
    %252 = vmatprep.mubr.bf16.mxu0 0
    %253 = vmatmul.mubr.bf16.gmra.mrb[0].mxu0 %v218
    %v254 = vpop.f32.mrb[0].mxu0
    %v255 = vadd.f32 %v203, %v254
    %v256 = vpop.f32.mrb[0].mxu0
    %v257 = vpop.f32.mrb[0].mxu0
    %v258 = vadd.f32 %v203, %v257
    %v259 = vpop.f32.mrb[0].mxu0
    %260 = vdwg.mxu0
    %v261 = vld [vmem:[#allocation11] sm:$0x1]
    %v263 = vlaneseq
    %v264 = vshrl.u32 %v263, 7
    %v265 = vsub.s32 0, %v264
    %v266 = vrot.slane %v261, %v265
    %v272 = vunpack.c.l.b16 %v152
    %v273 = vunpack.c.l.b16 %v153
    %v274 = vunpack.c.l.b16 %v154
    %v275 = vunpack.c.l.b16 %v155
    %v276 = vpack.c.b16 %v273, %v272
    %v277 = vpack.c.b16 %v275, %v274
    %v281 = vsel %vm120, %v197, 0
    %283 = vmatprep.subr.bf16.mxu0 0
    %284 = vmatpush1.bf16.msra.mxu0 %v276
    %285 = vmatprep.subr.bf16.mxu0 0
    %286 = vmatpush1.bf16.msra.mxu0 %v277
    %287 = vmatprep.subr.bf16.mxu0 0
    %288 = vmatpush1.bf16.msra.mxu0 0
    %289 = vmatprep.subr.bf16.mxu0 0
    %290 = vmatpush1.bf16.msra.mxu0 0
    %291 = vmatprep.subr.bf16.mxu0 0
    %292 = vmatpush1.bf16.msra.mxu0 0
    %293 = vmatprep.subr.bf16.mxu0 0
    %294 = vmatpush1.bf16.msra.mxu0 0
    %295 = vmatprep.subr.bf16.mxu0 0
    %296 = vmatpush1.bf16.msra.mxu0 0
    %297 = vmatprep.subr.bf16.mxu0 0
    %298 = vmatpush1.bf16.msra.mxu0 0
    %299 = vmatprep.subr.bf16.mxu0 0
    %300 = vmatpush1.bf16.msra.mxu0 0
    %301 = vmatprep.subr.bf16.mxu0 0
    %302 = vmatpush1.bf16.msra.mxu0 0
    %303 = vmatprep.subr.bf16.mxu0 0
    %304 = vmatpush1.bf16.msra.mxu0 0
    %305 = vmatprep.subr.bf16.mxu0 0
    %306 = vmatpush1.bf16.msra.mxu0 0
    %307 = vmatprep.subr.bf16.mxu0 0
    %308 = vmatpush1.bf16.msra.mxu0 0
    %309 = vmatprep.subr.bf16.mxu0 0
    %310 = vmatpush1.bf16.msra.mxu0 0
    %311 = vmatprep.subr.bf16.mxu0 0
    %312 = vmatpush1.bf16.msra.mxu0 0
    %313 = vmatprep.subr.bf16.mxu0 0
    %314 = vmatpush1.bf16.msra.mxu0 0
    %315 = vmatprep.mubr.bf16.mxu0 0
    %316 = vmatmul.mubr.bf16.gmra.mrb[0].mxu0 %v281
    %v317 = vpop.f32.mrb[0].mxu0
    %v318 = vadd.f32 %v266, %v317
    %v319 = vpop.f32.mrb[0].mxu0
    %v320 = vpop.f32.mrb[0].mxu0
    %v321 = vadd.f32 %v266, %v320
    %v322 = vpop.f32.mrb[0].mxu0
    %323 = vdwg.mxu0
    %v324 = vld [vmem:[%s10] sm:$0x1]
    %v326 = vlaneseq
    %v327 = vshrl.u32 %v326, 7
    %v328 = vsub.s32 0, %v327
    %v329 = vrot.slane %v324, %v328
    %v335 = vunpack.c.l.b16 %v156
    %v336 = vunpack.c.l.b16 %v157
    %v337 = vunpack.c.l.b16 %v158
    %v338 = vunpack.c.l.b16 %v159
    %v339 = vpack.c.b16 %v336, %v335
    %v340 = vpack.c.b16 %v338, %v337
    %343 = vmatprep.subr.bf16.mxu0 0
    %344 = vmatpush1.bf16.msra.mxu0 %v339
    %345 = vmatprep.subr.bf16.mxu0 0
    %346 = vmatpush1.bf16.msra.mxu0 %v340
    %347 = vmatprep.subr.bf16.mxu0 0
    %348 = vmatpush1.bf16.msra.mxu0 0
    %349 = vmatprep.subr.bf16.mxu0 0
    %350 = vmatpush1.bf16.msra.mxu0 0
    %351 = vmatprep.subr.bf16.mxu0 0
    %352 = vmatpush1.bf16.msra.mxu0 0
    %353 = vmatprep.subr.bf16.mxu0 0
    %354 = vmatpush1.bf16.msra.mxu0 0
    %355 = vmatprep.subr.bf16.mxu0 0
    %356 = vmatpush1.bf16.msra.mxu0 0
    %357 = vmatprep.subr.bf16.mxu0 0
    %358 = vmatpush1.bf16.msra.mxu0 0
    %359 = vmatprep.subr.bf16.mxu0 0
    %360 = vmatpush1.bf16.msra.mxu0 0
    %361 = vmatprep.subr.bf16.mxu0 0
    %362 = vmatpush1.bf16.msra.mxu0 0
    %363 = vmatprep.subr.bf16.mxu0 0
    %364 = vmatpush1.bf16.msra.mxu0 0
    %365 = vmatprep.subr.bf16.mxu0 0
    %366 = vmatpush1.bf16.msra.mxu0 0
    %367 = vmatprep.subr.bf16.mxu0 0
    %368 = vmatpush1.bf16.msra.mxu0 0
    %369 = vmatprep.subr.bf16.mxu0 0
    %370 = vmatpush1.bf16.msra.mxu0 0
    %371 = vmatprep.subr.bf16.mxu0 0
    %372 = vmatpush1.bf16.msra.mxu0 0
    %373 = vmatprep.subr.bf16.mxu0 0
    %374 = vmatpush1.bf16.msra.mxu0 0
    %375 = vmatprep.mubr.bf16.mxu0 0
    %376 = vmatmul.mubr.bf16.gmra.mrb[0].mxu0 %v281
    %v377 = vpop.f32.mrb[0].mxu0
    %v378 = vadd.f32 %v329, %v377
    %v379 = vpop.f32.mrb[0].mxu0
    %v380 = vpop.f32.mrb[0].mxu0
    %v381 = vadd.f32 %v329, %v380
    %v382 = vpop.f32.mrb[0].mxu0
    %383 = vdwg.mxu0
    %v384 = vpack.c.bf16 %v258, %v255
    %v386 = vunpack.c.l.b16 %v384
    %v387 = vunpack.c.h.b16 %v384
    %v388 = vpack.c.b16 %v386, %v386
    %v389 = vpack.c.b16 %v387, %v387
    %vm392 = vcmask 257024
    %393 = vst.msk [vmem:[#allocation13] sm:$0xf] %vm392, %v388
    %394 = vst.msk [vmem:[#allocation13 + $0x4] sm:$0xf] %vm392, %v389
    %v395 = vpack.c.bf16 %v321, %v318
    %v397 = vunpack.c.l.b16 %v395
    %v398 = vunpack.c.h.b16 %v395
    %v399 = vpack.c.b16 %v397, %v397
    %v400 = vpack.c.b16 %v398, %v398
    %403 = vst.msk [vmem:[#allocation14] sm:$0xf] %vm392, %v399
    %404 = vst.msk [vmem:[#allocation14 + $0x4] sm:$0xf] %vm392, %v400
    %v405 = vpack.c.bf16 %v381, %v378
    %v407 = vunpack.c.l.b16 %v405
    %v408 = vunpack.c.h.b16 %v405
    %v409 = vpack.c.b16 %v407, %v407
    %v410 = vpack.c.b16 %v408, %v408
    %413 = vst.msk [vmem:[#allocation16] sm:$0xf] %vm392, %v409
    %414 = vst.msk [vmem:[#allocation16 + $0x4] sm:$0xf] %vm392, %v410
    // Predicated region
    $region70: #{tpu_custom_call.1} parent=1 // pred_check
      _
    $region71: #{tpu_custom_call.1} parent=1 // pred_check_branch
      %416 = sbr.rel (0) target = $region73
    $region72: #{tpu_custom_call.1} parent=1 // pred_region
      %s418 = ssub.s32 128, 128
      %419 = vsyncadd [#allocation4], %s418
      %s420 = sshll.u32 [#allocation13], 4
      %s421 = int_to_ptr.vmem [resolvable:$true] %s420
      %426 = dma.vmem_to_hbm [thread:$0]  %s421, 128, %s11, [#allocation4], 64, 64, 4
    $region73: #{tpu_custom_call.1} parent=1 // pred_fallthru
      _
    // Predicated region
    $region74: #{tpu_custom_call.1} parent=1 // pred_check
      _
    $region75: #{tpu_custom_call.1} parent=1 // pred_check_branch
      %428 = sbr.rel (0) target = $region77
    $region76: #{tpu_custom_call.1} parent=1 // pred_region
      %s430 = ssub.s32 128, 128
      %431 = vsyncadd [#allocation15], %s430
      %s432 = sshll.u32 [#allocation14], 4
      %s433 = int_to_ptr.vmem [resolvable:$true] %s432
      %438 = dma.vmem_to_hbm [thread:$0]  %s433, 128, %s12, [#allocation15], 64, 64, 4
    $region77: #{tpu_custom_call.1} parent=1 // pred_fallthru
      _
    // Predicated region
    $region78: #{tpu_custom_call.1} parent=1 // pred_check
      _
    $region79: #{tpu_custom_call.1} parent=1 // pred_check_branch
      %440 = sbr.rel (0) target = $region81
    $region80: #{tpu_custom_call.1} parent=1 // pred_region
      %s442 = ssub.s32 128, 128
      %443 = vsyncadd [#allocation15], %s442
      %s444 = sshll.u32 [#allocation16], 4
      %s445 = int_to_ptr.vmem [resolvable:$true] %s444
      %450 = dma.vmem_to_hbm [thread:$0]  %s445, 128, %s13, [#allocation15], 64, 64, 4
    $region81: #{tpu_custom_call.1} parent=1 // pred_fallthru
      _
    // Predicated region
    $region82: #{tpu_custom_call.1} parent=1 // pred_check
      _
    $region83: #{tpu_custom_call.1} parent=1 // pred_check_branch
      %452 = sbr.rel (0) target = $region85
    $region84: #{tpu_custom_call.1} parent=1 // pred_region
      %453 = dma.done [#allocation4], 128
    $region85: #{tpu_custom_call.1} parent=1 // pred_fallthru
      _
    // Predicated region
    $region86: #{tpu_custom_call.1} parent=1 // pred_check
      _
    $region87: #{tpu_custom_call.1} parent=1 // pred_check_branch
      %455 = sbr.rel (0) target = $region89
    $region88: #{tpu_custom_call.1} parent=1 // pred_region
      %456 = dma.done [#allocation15], 128
    $region89: #{tpu_custom_call.1} parent=1 // pred_fallthru
      _
    // Predicated region
    $region90: #{tpu_custom_call.1} parent=1 // pred_check
      _
    $region91: #{tpu_custom_call.1} parent=1 // pred_check_branch
      %458 = sbr.rel (0) target = $region93
    $region92: #{tpu_custom_call.1} parent=1 // pred_region
      %459 = dma.done [#allocation15], 128
    $region93: #{tpu_custom_call.1} parent=1 // pred_fallthru
      _
    %460 = vsyncpa [#allocation3], 1
    %461 = vsyncpa [#allocation6], 1
    %462 = vsyncpa [#allocation9], 1
    %463 = vsyncpa [#allocation12], 1
    %464 = vsyncpa [#allocation4], 1
    %465 = vsyncpa [#allocation15], 1

</llo_original>
